<compile_context>
chip_gen: v5e
topology: v5e:2x2
jax: 0.10.0
libtpu: 0.0.40
codegen_flags: <defaults>
</compile_context>

<pallas_src>
import numpy as np
import jax
import jax.numpy as jnp
from jax.experimental import pallas as pl
from jax.experimental.pallas import tpu as pltpu

# ---- model hyper-parameters (small, consistent with the module) ----
BATCH = 2
SEQ_LEN = 8
VOCAB = 50
EMBED_DIM = 200          # hard-coded in the module
KERNEL_NUM = 20          # "kernel" arg; must be divisible by NUM_HEADS
KERNEL_SIZES = (2, 4)    # hard-coded in the module
NUM_HEADS = 10           # hard-coded in the module
NUM_CLASSES = 4
T_PAD = 8                # sublane-aligned padded conv-output length (L - ks + 1 <= 8)


# --------------------------------------------------------------------------
# Pallas kernel: whole batch in one step.
# --------------------------------------------------------------------------
def textcnn_kernel(u2_ref, w2_ref, b2_ref, m2_ref,
                   u4_ref, w4_ref, b4_ref, m4_ref,
                   wqk_ref, bqk_ref, gg_ref, wf_ref, bf_ref, out_ref):
    batch = out_ref.shape[0]
    c_dim = b2_ref.shape[1]

    # ---- conv branch: one unfolded matmul + bias + ReLU + masked max-pool ----
    def conv_pool(u_ref, w_ref, b_ref, m_ref):
        t_pad = u_ref.shape[0] // batch
        acc = jnp.dot(u_ref[...], w_ref[...], preferred_element_type=jnp.float32)
        acc = jnp.maximum(acc + b_ref[...], 0.0) * m_ref[...]   # mask pad rows -> 0
        # per-example global max over time (8-aligned sublane slices)
        return jnp.concatenate(
            [jnp.max(acc[b * t_pad:(b + 1) * t_pad, :], axis=0, keepdims=True)
             for b in range(batch)], axis=0)                    # (B, C)

    x0 = conv_pool(u2_ref, w2_ref, b2_ref, m2_ref)   # ks=2 branch -> position 0
    x1 = conv_pool(u4_ref, w4_ref, b4_ref, m4_ref)   # ks=4 branch -> position 1

    # ---- MHSA over N=2 positions, all heads at once ----
    wqk = wqk_ref[...]                               # (C, 2C)  fused [Wq.T | Wk.T]
    bqk = bqk_ref[...]                               # (1, 2C)
    qk0 = jnp.dot(x0, wqk, preferred_element_type=jnp.float32) + bqk
    qk1 = jnp.dot(x1, wqk, preferred_element_type=jnp.float32) + bqk
    q0, k0 = qk0[:, :c_dim], qk0[:, c_dim:]
    q1, k1 = qk1[:, :c_dim], qk1[:, c_dim:]
    # v = k (module quirk: forward uses self.k(x) for v)

    # lane-expanded per-head scores: (q_i * k_j) @ GG, where GG is the
    # block-diagonal head-grouping matrix with the C**-0.5 scale folded in.
    gg = gg_ref[...]                                 # (C, C)
    s00 = jnp.dot(q0 * k0, gg, preferred_element_type=jnp.float32)
    s01 = jnp.dot(q0 * k1, gg, preferred_element_type=jnp.float32)
    s10 = jnp.dot(q1 * k0, gg, preferred_element_type=jnp.float32)
    s11 = jnp.dot(q1 * k1, gg, preferred_element_type=jnp.float32)

    # per-lane softmax over j == per-head softmax (scores replicated across
    # each head's dh lanes); numerically stable, EUP reciprocal.
    m0 = jnp.maximum(s00, s01)
    e00 = jnp.exp(s00 - m0)
    e01 = jnp.exp(s01 - m0)
    r0 = pl.reciprocal(e00 + e01, approx=True)
    m1 = jnp.maximum(s10, s11)
    e10 = jnp.exp(s10 - m1)
    e11 = jnp.exp(s11 - m1)
    r1 = pl.reciprocal(e10 + e11, approx=True)

    a0 = (e00 * r0) * k0 + (e01 * r0) * k1           # (B, C)  attention output, pos 0
    a1 = (e10 * r1) * k0 + (e11 * r1) * k1           # (B, C)  attention output, pos 1

    # ---- residual add + final fc (no lane-flattening concats) ----
    y0 = a0 + x0
    y1 = a1 + x1
    logit = (jnp.dot(y0, wf_ref[0], preferred_element_type=jnp.float32)
             + jnp.dot(y1, wf_ref[1], preferred_element_type=jnp.float32)
             + bf_ref[...])
    out_ref[...] = logit                             # (B, num_classes)


# --------------------------------------------------------------------------
# Wrapper: embedding gather + layout prep (glue) + pallas_call (single step)
# --------------------------------------------------------------------------
def textcnn_forward(tokens, params):
    emb = params['embedding'][tokens].astype(jnp.float32)    # (B, L, E)  gather = glue
    B, L, E = emb.shape
    C = KERNEL_NUM

    def unfold(ks):
        T = L - ks + 1
        cols = jnp.concatenate([emb[:, j:j + T, :] for j in range(ks)], axis=-1)  # (B,T,ks*E)
        pad = jnp.zeros((B, T_PAD - T, ks * E), emb.dtype)
        u = jnp.concatenate([cols, pad], axis=1).reshape(B * T_PAD, ks * E)
        mask = (jnp.arange(T_PAD) < T).astype(jnp.float32)
        mask = jnp.tile(mask, (B,)).reshape(B * T_PAD, 1)
        return u.astype(jnp.bfloat16), mask

    u2, m2 = unfold(KERNEL_SIZES[0])
    u4, m4 = unfold(KERNEL_SIZES[1])

    # conv weights -> (ks*E, C), bf16 (MXU operands only; bias stays f32)
    w2 = jnp.transpose(params['conv2_w'][:, 0], (1, 2, 0)).reshape(2 * E, C).astype(jnp.bfloat16)
    w4 = jnp.transpose(params['conv4_w'][:, 0], (1, 2, 0)).reshape(4 * E, C).astype(jnp.bfloat16)
    b2 = params['conv2_b'][None, :]
    b4 = params['conv4_b'][None, :]

    # fused Q/K projection
    wqk = jnp.concatenate([params['wq'].T, params['wk'].T], axis=1)      # (C, 2C)
    bqk = jnp.concatenate([params['bq'], params['bk']])[None, :]         # (1, 2C)

    # block-diagonal head-grouping matrix, attention scale folded in
    dh = C // NUM_HEADS
    head_id = np.arange(C) // dh
    gg = jnp.asarray((head_id[:, None] == head_id[None, :]).astype(np.float32)
                     * (float(C) ** -0.5))                               # (C, C)

    # fc weight split per position: (N=2, C, num_classes)
    wf = params['wf'].T.reshape(2, C, NUM_CLASSES)
    bf = params['bf'][None, :]

    args = (u2, w2, b2, m2, u4, w4, b4, m4, wqk, bqk, gg, wf, bf)

    def full(a):
        nd = a.ndim
        return pl.BlockSpec(a.shape, lambda i, _n=nd: (0,) * _n)

    return pl.pallas_call(
        textcnn_kernel,
        out_shape=jax.ShapeDtypeStruct((B, NUM_CLASSES), jnp.float32),
        grid=(1,),
        in_specs=[full(a) for a in args],
        out_specs=pl.BlockSpec((B, NUM_CLASSES), lambda i: (0, 0)),
        compiler_params=pltpu.CompilerParams(dimension_semantics=("arbitrary",)),
    )(*args)


# --------------------------------------------------------------------------
# Pure-JAX reference (mirrors the PyTorch forward, eval mode, f32)
# --------------------------------------------------------------------------
def reference_forward(tokens, params):
    emb = params['embedding'][tokens].astype(jnp.float32)   # (B, L, E)
    B, L, _ = emb.shape
    feats = []
    for ks in KERNEL_SIZES:
        w = params[f'conv{ks}_w'][:, 0]                      # (C, ks, E)
        b = params[f'conv{ks}_b']
        T = L - ks + 1
        out = jnp.stack(
            [jnp.einsum('bjd,cjd->bc', emb[:, t:t + ks, :], w) for t in range(T)],
            axis=2) + b[None, :, None]                       # (B, C, T)
        out = jax.nn.relu(out)
        feats.append(jnp.max(out, axis=2)[:, None, :])       # (B, 1, C)
    x = jnp.concatenate(feats, axis=1)                       # (B, 2, C)
    o = x.reshape(B, -1)

    C = x.shape[-1]
    N = x.shape[1]
    dh = C // NUM_HEADS
    q = x @ params['wq'].T + params['bq']
    k = x @ params['wk'].T + params['bk']
    v = k
    qh = q.reshape(B, N, NUM_HEADS, dh).transpose(0, 2, 1, 3)
    kh = k.reshape(B, N, NUM_HEADS, dh).transpose(0, 2, 1, 3)
    vh = v.reshape(B, N, NUM_HEADS, dh).transpose(0, 2, 1, 3)
    attn = jnp.einsum('bhid,bhjd->bhij', qh, kh) * (C ** -0.5)
    attn = jax.nn.softmax(attn, axis=-1)
    mhsa = jnp.einsum('bhij,bhjd->bhid', attn, vh)
    mhsa = mhsa.transpose(0, 2, 1, 3).reshape(B, N, C)

    logit = mhsa.reshape(B, -1) + o
    return logit @ params['wf'].T + params['bf']


# --------------------------------------------------------------------------
# Deterministic parameter init (synthetic, no checkpoint files)
# --------------------------------------------------------------------------
def init_params(key):
    ks = jax.random.split(key, 8)
    p = {}
    p['embedding'] = jax.random.uniform(ks[0], (VOCAB, EMBED_DIM), jnp.float32, -1.0, 1.0)
    p['conv2_w'] = jax.random.uniform(ks[1], (KERNEL_NUM, 1, 2, EMBED_DIM), jnp.float32, -0.1, 0.1)
    p['conv2_b'] = jax.random.uniform(ks[2], (KERNEL_NUM,), jnp.float32, -0.1, 0.1)
    p['conv4_w'] = jax.random.uniform(ks[3], (KERNEL_NUM, 1, 4, EMBED_DIM), jnp.float32, -0.1, 0.1)
    p['conv4_b'] = jax.random.uniform(ks[4], (KERNEL_NUM,), jnp.float32, -0.1, 0.1)
    p['wq'] = jax.random.uniform(ks[5], (KERNEL_NUM, KERNEL_NUM), jnp.float32, -0.2, 0.2)
    p['bq'] = jnp.zeros((KERNEL_NUM,), jnp.float32)
    p['wk'] = jax.random.uniform(ks[6], (KERNEL_NUM, KERNEL_NUM), jnp.float32, -0.2, 0.2)
    p['bk'] = jnp.zeros((KERNEL_NUM,), jnp.float32)
    p['wf'] = jax.random.uniform(ks[7], (NUM_CLASSES, 2 * KERNEL_NUM), jnp.float32, -0.2, 0.2)
    p['bf'] = jnp.zeros((NUM_CLASSES,), jnp.float32)
    return p


if __name__ == "__main__":
    key = jax.random.PRNGKey(0)
    pkey, tkey = jax.random.split(key)
    params = init_params(pkey)
    tokens = jax.random.randint(tkey, (BATCH, SEQ_LEN), 0, VOCAB)

    out = textcnn_forward(tokens, params)
    out = jax.block_until_ready(out)

    ref = reference_forward(tokens, params)
    np.testing.assert_allclose(np.asarray(out), np.asarray(ref), rtol=5e-2, atol=5e-2)
    print("KERNEL_OK")
</pallas_src>

<mosaic_0001>
module attributes {stable_mosaic.version = 11 : i64} {
  func.func @textcnn_kernel(%arg0: i32, %arg1: memref<16x400xbf16, #tpu.memory_space<vmem>>, %arg2: memref<400x20xbf16, #tpu.memory_space<vmem>>, %arg3: memref<1x20xf32, #tpu.memory_space<vmem>>, %arg4: memref<16x1xf32, #tpu.memory_space<vmem>>, %arg5: memref<16x800xbf16, #tpu.memory_space<vmem>>, %arg6: memref<800x20xbf16, #tpu.memory_space<vmem>>, %arg7: memref<1x20xf32, #tpu.memory_space<vmem>>, %arg8: memref<16x1xf32, #tpu.memory_space<vmem>>, %arg9: memref<20x40xf32, #tpu.memory_space<vmem>>, %arg10: memref<1x40xf32, #tpu.memory_space<vmem>>, %arg11: memref<20x20xf32, #tpu.memory_space<vmem>>, %arg12: memref<2x20x4xf32, #tpu.memory_space<vmem>>, %arg13: memref<1x4xf32, #tpu.memory_space<vmem>>, %arg14: memref<2x4xf32, #tpu.memory_space<vmem>>) attributes {dimension_semantics = [#tpu.dimension_semantics<arbitrary>], iteration_bounds = array<i64: 1>, scalar_prefetch = 0 : i64, scratch_operands = 0 : i64, tpu.core_type = #tpu.core_type<tc>, window_params = [{pipeline_mode = #tpu.pipeline_mode<synchronous>, transform_indices = @transform_0, window_bounds = array<i64: 16, 400>}, {pipeline_mode = #tpu.pipeline_mode<synchronous>, transform_indices = @transform_1, window_bounds = array<i64: 400, 20>}, {pipeline_mode = #tpu.pipeline_mode<synchronous>, transform_indices = @transform_2, window_bounds = array<i64: 1, 20>}, {pipeline_mode = #tpu.pipeline_mode<synchronous>, transform_indices = @transform_3, window_bounds = array<i64: 16, 1>}, {pipeline_mode = #tpu.pipeline_mode<synchronous>, transform_indices = @transform_4, window_bounds = array<i64: 16, 800>}, {pipeline_mode = #tpu.pipeline_mode<synchronous>, transform_indices = @transform_5, window_bounds = array<i64: 800, 20>}, {pipeline_mode = #tpu.pipeline_mode<synchronous>, transform_indices = @transform_6, window_bounds = array<i64: 1, 20>}, {pipeline_mode = #tpu.pipeline_mode<synchronous>, transform_indices = @transform_7, window_bounds = array<i64: 16, 1>}, {pipeline_mode = #tpu.pipeline_mode<synchronous>, transform_indices = @transform_8, window_bounds = array<i64: 20, 40>}, {pipeline_mode = #tpu.pipeline_mode<synchronous>, transform_indices = @transform_9, window_bounds = array<i64: 1, 40>}, {pipeline_mode = #tpu.pipeline_mode<synchronous>, transform_indices = @transform_10, window_bounds = array<i64: 20, 20>}, {pipeline_mode = #tpu.pipeline_mode<synchronous>, transform_indices = @transform_11, window_bounds = array<i64: 2, 20, 4>}, {pipeline_mode = #tpu.pipeline_mode<synchronous>, transform_indices = @transform_12, window_bounds = array<i64: 1, 4>}, {pipeline_mode = #tpu.pipeline_mode<synchronous>, transform_indices = @transform_13, window_bounds = array<i64: 2, 4>}]} {
    %c0 = arith.constant 0 : index
    %c0_0 = arith.constant 0 : index
    %0 = vector.load %arg1[%c0, %c0_0] : memref<16x400xbf16, #tpu.memory_space<vmem>>, vector<16x400xbf16>
    %c0_1 = arith.constant 0 : index
    %c0_2 = arith.constant 0 : index
    %1 = vector.load %arg2[%c0_1, %c0_2] : memref<400x20xbf16, #tpu.memory_space<vmem>>, vector<400x20xbf16>
    %cst = arith.constant dense<0.000000e+00> : vector<16x20xf32>
    %2 = tpu.matmul %0, %1, %cst {dimension_numbers = #tpu.dot_dimension_numbers<[1], [0], [0], [1], [0, 0, 1, 1], [], []>} : vector<16x400xbf16>, vector<400x20xbf16>, vector<16x20xf32> -> vector<16x20xf32>
    %c0_3 = arith.constant 0 : index
    %c0_4 = arith.constant 0 : index
    %3 = vector.load %arg3[%c0_3, %c0_4] : memref<1x20xf32, #tpu.memory_space<vmem>>, vector<1x20xf32>
    %4 = vector.broadcast %3 : vector<1x20xf32> to vector<16x20xf32>
    %5 = arith.addf %2, %4 : vector<16x20xf32>
    %cst_5 = arith.constant 0.000000e+00 : f32
    %6 = vector.broadcast %cst_5 : f32 to vector<16x20xf32>
    %7 = arith.maximumf %5, %6 : vector<16x20xf32>
    %c0_6 = arith.constant 0 : index
    %c0_7 = arith.constant 0 : index
    %8 = vector.load %arg4[%c0_6, %c0_7] : memref<16x1xf32, #tpu.memory_space<vmem>>, vector<16x1xf32>
    %9 = vector.broadcast %8 : vector<16x1xf32> to vector<16x20xf32>
    %10 = arith.mulf %7, %9 : vector<16x20xf32>
    %11 = vector.extract_strided_slice %10 {offsets = [0, 0], sizes = [8, 20], strides = [1, 1]} : vector<16x20xf32> to vector<8x20xf32>
    %cst_8 = arith.constant dense<0xFF800000> : vector<20xf32>
    %12 = vector.multi_reduction <maximumf>, %11, %cst_8 [0] : vector<8x20xf32> to vector<20xf32>
    %13 = vector.shape_cast %12 : vector<20xf32> to vector<1x20xf32>
    %14 = vector.extract_strided_slice %10 {offsets = [8, 0], sizes = [8, 20], strides = [1, 1]} : vector<16x20xf32> to vector<8x20xf32>
    %cst_9 = arith.constant dense<0xFF800000> : vector<20xf32>
    %15 = vector.multi_reduction <maximumf>, %14, %cst_9 [0] : vector<8x20xf32> to vector<20xf32>
    %16 = vector.shape_cast %15 : vector<20xf32> to vector<1x20xf32>
    %17 = tpu.concatenate %13, %16 in 0 : vector<1x20xf32>, vector<1x20xf32> -> vector<2x20xf32>
    %c0_10 = arith.constant 0 : index
    %c0_11 = arith.constant 0 : index
    %18 = vector.load %arg5[%c0_10, %c0_11] : memref<16x800xbf16, #tpu.memory_space<vmem>>, vector<16x800xbf16>
    %c0_12 = arith.constant 0 : index
    %c0_13 = arith.constant 0 : index
    %19 = vector.load %arg6[%c0_12, %c0_13] : memref<800x20xbf16, #tpu.memory_space<vmem>>, vector<800x20xbf16>
    %cst_14 = arith.constant dense<0.000000e+00> : vector<16x20xf32>
    %20 = tpu.matmul %18, %19, %cst_14 {dimension_numbers = #tpu.dot_dimension_numbers<[1], [0], [0], [1], [0, 0, 1, 1], [], []>} : vector<16x800xbf16>, vector<800x20xbf16>, vector<16x20xf32> -> vector<16x20xf32>
    %c0_15 = arith.constant 0 : index
    %c0_16 = arith.constant 0 : index
    %21 = vector.load %arg7[%c0_15, %c0_16] : memref<1x20xf32, #tpu.memory_space<vmem>>, vector<1x20xf32>
    %22 = vector.broadcast %21 : vector<1x20xf32> to vector<16x20xf32>
    %23 = arith.addf %20, %22 : vector<16x20xf32>
    %cst_17 = arith.constant 0.000000e+00 : f32
    %24 = vector.broadcast %cst_17 : f32 to vector<16x20xf32>
    %25 = arith.maximumf %23, %24 : vector<16x20xf32>
    %c0_18 = arith.constant 0 : index
    %c0_19 = arith.constant 0 : index
    %26 = vector.load %arg8[%c0_18, %c0_19] : memref<16x1xf32, #tpu.memory_space<vmem>>, vector<16x1xf32>
    %27 = vector.broadcast %26 : vector<16x1xf32> to vector<16x20xf32>
    %28 = arith.mulf %25, %27 : vector<16x20xf32>
    %29 = vector.extract_strided_slice %28 {offsets = [0, 0], sizes = [8, 20], strides = [1, 1]} : vector<16x20xf32> to vector<8x20xf32>
    %cst_20 = arith.constant dense<0xFF800000> : vector<20xf32>
    %30 = vector.multi_reduction <maximumf>, %29, %cst_20 [0] : vector<8x20xf32> to vector<20xf32>
    %31 = vector.shape_cast %30 : vector<20xf32> to vector<1x20xf32>
    %32 = vector.extract_strided_slice %28 {offsets = [8, 0], sizes = [8, 20], strides = [1, 1]} : vector<16x20xf32> to vector<8x20xf32>
    %cst_21 = arith.constant dense<0xFF800000> : vector<20xf32>
    %33 = vector.multi_reduction <maximumf>, %32, %cst_21 [0] : vector<8x20xf32> to vector<20xf32>
    %34 = vector.shape_cast %33 : vector<20xf32> to vector<1x20xf32>
    %35 = tpu.concatenate %31, %34 in 0 : vector<1x20xf32>, vector<1x20xf32> -> vector<2x20xf32>
    %c0_22 = arith.constant 0 : index
    %c0_23 = arith.constant 0 : index
    %36 = vector.load %arg9[%c0_22, %c0_23] : memref<20x40xf32, #tpu.memory_space<vmem>>, vector<20x40xf32>
    %c0_24 = arith.constant 0 : index
    %c0_25 = arith.constant 0 : index
    %37 = vector.load %arg10[%c0_24, %c0_25] : memref<1x40xf32, #tpu.memory_space<vmem>>, vector<1x40xf32>
    %cst_26 = arith.constant dense<0.000000e+00> : vector<2x40xf32>
    %38 = tpu.matmul %17, %36, %cst_26 {dimension_numbers = #tpu.dot_dimension_numbers<[1], [0], [0], [1], [0, 0, 1, 1], [], []>} : vector<2x20xf32>, vector<20x40xf32>, vector<2x40xf32> -> vector<2x40xf32>
    %39 = vector.broadcast %37 : vector<1x40xf32> to vector<2x40xf32>
    %40 = arith.addf %38, %39 : vector<2x40xf32>
    %cst_27 = arith.constant dense<0.000000e+00> : vector<2x40xf32>
    %41 = tpu.matmul %35, %36, %cst_27 {dimension_numbers = #tpu.dot_dimension_numbers<[1], [0], [0], [1], [0, 0, 1, 1], [], []>} : vector<2x20xf32>, vector<20x40xf32>, vector<2x40xf32> -> vector<2x40xf32>
    %42 = vector.broadcast %37 : vector<1x40xf32> to vector<2x40xf32>
    %43 = arith.addf %41, %42 : vector<2x40xf32>
    %44 = vector.extract_strided_slice %40 {offsets = [0, 0], sizes = [2, 20], strides = [1, 1]} : vector<2x40xf32> to vector<2x20xf32>
    %45 = vector.extract_strided_slice %40 {offsets = [0, 20], sizes = [2, 20], strides = [1, 1]} : vector<2x40xf32> to vector<2x20xf32>
    %46 = vector.extract_strided_slice %43 {offsets = [0, 0], sizes = [2, 20], strides = [1, 1]} : vector<2x40xf32> to vector<2x20xf32>
    %47 = vector.extract_strided_slice %43 {offsets = [0, 20], sizes = [2, 20], strides = [1, 1]} : vector<2x40xf32> to vector<2x20xf32>
    %c0_28 = arith.constant 0 : index
    %c0_29 = arith.constant 0 : index
    %48 = vector.load %arg11[%c0_28, %c0_29] : memref<20x20xf32, #tpu.memory_space<vmem>>, vector<20x20xf32>
    %49 = arith.mulf %44, %45 : vector<2x20xf32>
    %cst_30 = arith.constant dense<0.000000e+00> : vector<2x20xf32>
    %50 = tpu.matmul %49, %48, %cst_30 {dimension_numbers = #tpu.dot_dimension_numbers<[1], [0], [0], [1], [0, 0, 1, 1], [], []>} : vector<2x20xf32>, vector<20x20xf32>, vector<2x20xf32> -> vector<2x20xf32>
    %51 = arith.mulf %44, %47 : vector<2x20xf32>
    %cst_31 = arith.constant dense<0.000000e+00> : vector<2x20xf32>
    %52 = tpu.matmul %51, %48, %cst_31 {dimension_numbers = #tpu.dot_dimension_numbers<[1], [0], [0], [1], [0, 0, 1, 1], [], []>} : vector<2x20xf32>, vector<20x20xf32>, vector<2x20xf32> -> vector<2x20xf32>
    %53 = arith.mulf %46, %45 : vector<2x20xf32>
    %cst_32 = arith.constant dense<0.000000e+00> : vector<2x20xf32>
    %54 = tpu.matmul %53, %48, %cst_32 {dimension_numbers = #tpu.dot_dimension_numbers<[1], [0], [0], [1], [0, 0, 1, 1], [], []>} : vector<2x20xf32>, vector<20x20xf32>, vector<2x20xf32> -> vector<2x20xf32>
    %55 = arith.mulf %46, %47 : vector<2x20xf32>
    %cst_33 = arith.constant dense<0.000000e+00> : vector<2x20xf32>
    %56 = tpu.matmul %55, %48, %cst_33 {dimension_numbers = #tpu.dot_dimension_numbers<[1], [0], [0], [1], [0, 0, 1, 1], [], []>} : vector<2x20xf32>, vector<20x20xf32>, vector<2x20xf32> -> vector<2x20xf32>
    %57 = arith.maximumf %50, %52 : vector<2x20xf32>
    %58 = arith.subf %50, %57 : vector<2x20xf32>
    %59 = math.exp %58 : vector<2x20xf32>
    %60 = arith.subf %52, %57 : vector<2x20xf32>
    %61 = math.exp %60 : vector<2x20xf32>
    %62 = arith.addf %59, %61 : vector<2x20xf32>
    %63 = tpu.reciprocal %62 {approx = true} : vector<2x20xf32> -> vector<2x20xf32>
    %64 = arith.maximumf %54, %56 : vector<2x20xf32>
    %65 = arith.subf %54, %64 : vector<2x20xf32>
    %66 = math.exp %65 : vector<2x20xf32>
    %67 = arith.subf %56, %64 : vector<2x20xf32>
    %68 = math.exp %67 : vector<2x20xf32>
    %69 = arith.addf %66, %68 : vector<2x20xf32>
    %70 = tpu.reciprocal %69 {approx = true} : vector<2x20xf32> -> vector<2x20xf32>
    %71 = arith.mulf %59, %63 : vector<2x20xf32>
    %72 = arith.mulf %71, %45 : vector<2x20xf32>
    %73 = arith.mulf %61, %63 : vector<2x20xf32>
    %74 = arith.mulf %73, %47 : vector<2x20xf32>
    %75 = arith.addf %72, %74 : vector<2x20xf32>
    %76 = arith.mulf %66, %70 : vector<2x20xf32>
    %77 = arith.mulf %76, %45 : vector<2x20xf32>
    %78 = arith.mulf %68, %70 : vector<2x20xf32>
    %79 = arith.mulf %78, %47 : vector<2x20xf32>
    %80 = arith.addf %77, %79 : vector<2x20xf32>
    %81 = arith.addf %75, %17 : vector<2x20xf32>
    %82 = arith.addf %80, %35 : vector<2x20xf32>
    %c0_34 = arith.constant 0 : index
    %c0_35 = arith.constant 0 : index
    %c0_36 = arith.constant 0 : index
    %83 = vector.load %arg12[%c0_34, %c0_35, %c0_36] : memref<2x20x4xf32, #tpu.memory_space<vmem>>, vector<1x20x4xf32>
    %84 = vector.shape_cast %83 : vector<1x20x4xf32> to vector<20x4xf32>
    %cst_37 = arith.constant dense<0.000000e+00> : vector<2x4xf32>
    %85 = tpu.matmul %81, %84, %cst_37 {dimension_numbers = #tpu.dot_dimension_numbers<[1], [0], [0], [1], [0, 0, 1, 1], [], []>} : vector<2x20xf32>, vector<20x4xf32>, vector<2x4xf32> -> vector<2x4xf32>
    %c1 = arith.constant 1 : index
    %c0_38 = arith.constant 0 : index
    %c0_39 = arith.constant 0 : index
    %86 = vector.load %arg12[%c1, %c0_38, %c0_39] : memref<2x20x4xf32, #tpu.memory_space<vmem>>, vector<1x20x4xf32>
    %87 = vector.shape_cast %86 : vector<1x20x4xf32> to vector<20x4xf32>
    %cst_40 = arith.constant dense<0.000000e+00> : vector<2x4xf32>
    %88 = tpu.matmul %82, %87, %cst_40 {dimension_numbers = #tpu.dot_dimension_numbers<[1], [0], [0], [1], [0, 0, 1, 1], [], []>} : vector<2x20xf32>, vector<20x4xf32>, vector<2x4xf32> -> vector<2x4xf32>
    %89 = arith.addf %85, %88 : vector<2x4xf32>
    %c0_41 = arith.constant 0 : index
    %c0_42 = arith.constant 0 : index
    %90 = vector.load %arg13[%c0_41, %c0_42] : memref<1x4xf32, #tpu.memory_space<vmem>>, vector<1x4xf32>
    %91 = vector.broadcast %90 : vector<1x4xf32> to vector<2x4xf32>
    %92 = arith.addf %89, %91 : vector<2x4xf32>
    %c0_43 = arith.constant 0 : index
    %c0_44 = arith.constant 0 : index
    %93 = vector.load %arg14[%c0_43, %c0_44] : memref<2x4xf32, #tpu.memory_space<vmem>>, vector<2x4xf32>
    tpu.vector_store %arg14[%c0_43, %c0_44], %92 {strides = array<i32>} : memref<2x4xf32, #tpu.memory_space<vmem>>, vector<2x4xf32>,
    return
  }
  func.func @transform_0(%arg0: i32) -> (i32, i32) {
    %c0_i32 = arith.constant 0 : i32
    %c0_i32_0 = arith.constant 0 : i32
    %c0_i32_1 = arith.constant 0 : i32
    return %c0_i32, %c0_i32_0 : i32, i32
  }
  func.func @transform_1(%arg0: i32) -> (i32, i32) {
    %c0_i32 = arith.constant 0 : i32
    %c0_i32_0 = arith.constant 0 : i32
    %c0_i32_1 = arith.constant 0 : i32
    return %c0_i32, %c0_i32_0 : i32, i32
  }
  func.func @transform_2(%arg0: i32) -> (i32, i32) {
    %c0_i32 = arith.constant 0 : i32
    %c0_i32_0 = arith.constant 0 : i32
    %c0_i32_1 = arith.constant 0 : i32
    return %c0_i32, %c0_i32_0 : i32, i32
  }
  func.func @transform_3(%arg0: i32) -> (i32, i32) {
    %c0_i32 = arith.constant 0 : i32
    %c0_i32_0 = arith.constant 0 : i32
    %c0_i32_1 = arith.constant 0 : i32
    return %c0_i32, %c0_i32_0 : i32, i32
  }
  func.func @transform_4(%arg0: i32) -> (i32, i32) {
    %c0_i32 = arith.constant 0 : i32
    %c0_i32_0 = arith.constant 0 : i32
    %c0_i32_1 = arith.constant 0 : i32
    return %c0_i32, %c0_i32_0 : i32, i32
  }
  func.func @transform_5(%arg0: i32) -> (i32, i32) {
    %c0_i32 = arith.constant 0 : i32
    %c0_i32_0 = arith.constant 0 : i32
    %c0_i32_1 = arith.constant 0 : i32
    return %c0_i32, %c0_i32_0 : i32, i32
  }
  func.func @transform_6(%arg0: i32) -> (i32, i32) {
    %c0_i32 = arith.constant 0 : i32
    %c0_i32_0 = arith.constant 0 : i32
    %c0_i32_1 = arith.constant 0 : i32
    return %c0_i32, %c0_i32_0 : i32, i32
  }
  func.func @transform_7(%arg0: i32) -> (i32, i32) {
    %c0_i32 = arith.constant 0 : i32
    %c0_i32_0 = arith.constant 0 : i32
    %c0_i32_1 = arith.constant 0 : i32
    return %c0_i32, %c0_i32_0 : i32, i32
  }
  func.func @transform_8(%arg0: i32) -> (i32, i32) {
    %c0_i32 = arith.constant 0 : i32
    %c0_i32_0 = arith.constant 0 : i32
    %c0_i32_1 = arith.constant 0 : i32
    return %c0_i32, %c0_i32_0 : i32, i32
  }
  func.func @transform_9(%arg0: i32) -> (i32, i32) {
    %c0_i32 = arith.constant 0 : i32
    %c0_i32_0 = arith.constant 0 : i32
    %c0_i32_1 = arith.constant 0 : i32
    return %c0_i32, %c0_i32_0 : i32, i32
  }
  func.func @transform_10(%arg0: i32) -> (i32, i32) {
    %c0_i32 = arith.constant 0 : i32
    %c0_i32_0 = arith.constant 0 : i32
    %c0_i32_1 = arith.constant 0 : i32
    return %c0_i32, %c0_i32_0 : i32, i32
  }
  func.func @transform_11(%arg0: i32) -> (i32, i32, i32) {
    %c0_i32 = arith.constant 0 : i32
    %c0_i32_0 = arith.constant 0 : i32
    %c0_i32_1 = arith.constant 0 : i32
    %c0_i32_2 = arith.constant 0 : i32
    return %c0_i32, %c0_i32_0, %c0_i32_1 : i32, i32, i32
  }
  func.func @transform_12(%arg0: i32) -> (i32, i32) {
    %c0_i32 = arith.constant 0 : i32
    %c0_i32_0 = arith.constant 0 : i32
    %c0_i32_1 = arith.constant 0 : i32
    return %c0_i32, %c0_i32_0 : i32, i32
  }
  func.func @transform_13(%arg0: i32) -> (i32, i32) {
    %c0_i32 = arith.constant 0 : i32
    %c0_i32_0 = arith.constant 0 : i32
    %c0_i32_1 = arith.constant 0 : i32
    return %c0_i32, %c0_i32_0 : i32, i32
  }
}

</mosaic_0001>

<llo_original>
// kernel: tpu_custom_call.1
$region0: #{tpu_custom_call.1}
  #allocation0 [shape = 'u32[]', space=smem, size = 0x4, offset = 0x4, fixed_abs, tag = 'smem constant byte address 0x4 - core index']
  #allocation1 [shape = 'u32[72,128]{1,0:T(1,128)}', space=vmem, size = 0x9000, scoped, tag = 'internal scratch']
  %s0 = inlined_call_operand.vmem [shape: bf16[16,400], index: 0, kind: input, shape index: {}]
  %s1 = inlined_call_operand.vmem [shape: bf16[400,20], index: 1, kind: input, shape index: {}]
  %s2 = inlined_call_operand.vmem [shape: f32[1,20], index: 2, kind: input, shape index: {}]
  %s3 = inlined_call_operand.vmem [shape: f32[16,1], index: 3, kind: input, shape index: {}]
  %s4 = inlined_call_operand.vmem [shape: bf16[16,800], index: 4, kind: input, shape index: {}]
  %s5 = inlined_call_operand.vmem [shape: bf16[800,20], index: 5, kind: input, shape index: {}]
  %s6 = inlined_call_operand.vmem [shape: f32[1,20], index: 6, kind: input, shape index: {}]
  %s7 = inlined_call_operand.vmem [shape: f32[16,1], index: 7, kind: input, shape index: {}]
  %s8 = inlined_call_operand.vmem [shape: f32[20,40], index: 8, kind: input, shape index: {}]
  %s9 = inlined_call_operand.vmem [shape: f32[1,40], index: 9, kind: input, shape index: {}]
  %s10 = inlined_call_operand.vmem [shape: f32[20,20], index: 10, kind: input, shape index: {}]
  %s11 = inlined_call_operand.vmem [shape: f32[2,20,4], index: 11, kind: input, shape index: {}]
  %s12 = inlined_call_operand.vmem [shape: f32[1,4], index: 12, kind: input, shape index: {}]
  %s13 = inlined_call_operand.hbm [shape: f32[2,4], index: 13, kind: output, shape index: {}]
  %s14 = sld [smem:[#allocation0]]
  $region62: #{tpu_custom_call.1} parent=0
    _
  %s16 = ssub.s32 1, %s14
  %s17 = scalar_select 0, %s16, %s14
  $region1: #{tpu_custom_call.1} parent=0
    #allocation2 [shape = 'u8[1024]{0}', space=vmem, size = 0x400, scoped, tag = 'output window, operand 0, single buffered']
    #allocation3 [shape = 's32[1]{0}', space=sflag, size = 0x4, scoped, tag = 'scoped memory for tpu_custom_call.1']
    %18 = vsyncpa [#allocation3], 0
    // Predicated region
    $region2: #{tpu_custom_call.1} parent=1 // pred_check
      _
    $region3: #{tpu_custom_call.1} parent=1 // pred_check_branch
      %20 = sbr.rel (0) target = $region5
    $region4: #{tpu_custom_call.1} parent=1 // pred_region
      _
    $region5: #{tpu_custom_call.1} parent=1 // pred_fallthru
      _
    // Predicated region
    $region6: #{tpu_custom_call.1} parent=1 // pred_check
      _
    $region7: #{tpu_custom_call.1} parent=1 // pred_check_branch
      %22 = sbr.rel (0) target = $region9
    $region8: #{tpu_custom_call.1} parent=1 // pred_region
      _
    $region9: #{tpu_custom_call.1} parent=1 // pred_fallthru
      _
    // Predicated region
    $region10: #{tpu_custom_call.1} parent=1 // pred_check
      _
    $region11: #{tpu_custom_call.1} parent=1 // pred_check_branch
      %24 = sbr.rel (0) target = $region13
    $region12: #{tpu_custom_call.1} parent=1 // pred_region
      _
    $region13: #{tpu_custom_call.1} parent=1 // pred_fallthru
      _
    // Predicated region
    $region14: #{tpu_custom_call.1} parent=1 // pred_check
      _
    $region15: #{tpu_custom_call.1} parent=1 // pred_check_branch
      %26 = sbr.rel (0) target = $region17
    $region16: #{tpu_custom_call.1} parent=1 // pred_region
      _
    $region17: #{tpu_custom_call.1} parent=1 // pred_fallthru
      _
    // Predicated region
    $region18: #{tpu_custom_call.1} parent=1 // pred_check
      _
    $region19: #{tpu_custom_call.1} parent=1 // pred_check_branch
      %28 = sbr.rel (0) target = $region21
    $region20: #{tpu_custom_call.1} parent=1 // pred_region
      _
    $region21: #{tpu_custom_call.1} parent=1 // pred_fallthru
      _
    // Predicated region
    $region22: #{tpu_custom_call.1} parent=1 // pred_check
      _
    $region23: #{tpu_custom_call.1} parent=1 // pred_check_branch
      %30 = sbr.rel (0) target = $region25
    $region24: #{tpu_custom_call.1} parent=1 // pred_region
      _
    $region25: #{tpu_custom_call.1} parent=1 // pred_fallthru
      _
    // Predicated region
    $region26: #{tpu_custom_call.1} parent=1 // pred_check
      _
    $region27: #{tpu_custom_call.1} parent=1 // pred_check_branch
      %32 = sbr.rel (0) target = $region29
    $region28: #{tpu_custom_call.1} parent=1 // pred_region
      _
    $region29: #{tpu_custom_call.1} parent=1 // pred_fallthru
      _
    // Predicated region
    $region30: #{tpu_custom_call.1} parent=1 // pred_check
      _
    $region31: #{tpu_custom_call.1} parent=1 // pred_check_branch
      %34 = sbr.rel (0) target = $region33
    $region32: #{tpu_custom_call.1} parent=1 // pred_region
      _
    $region33: #{tpu_custom_call.1} parent=1 // pred_fallthru
      _
    // Predicated region
    $region34: #{tpu_custom_call.1} parent=1 // pred_check
      _
    $region35: #{tpu_custom_call.1} parent=1 // pred_check_branch
      %36 = sbr.rel (0) target = $region37
    $region36: #{tpu_custom_call.1} parent=1 // pred_region
      _
    $region37: #{tpu_custom_call.1} parent=1 // pred_fallthru
      _
    // Predicated region
    $region38: #{tpu_custom_call.1} parent=1 // pred_check
      _
    $region39: #{tpu_custom_call.1} parent=1 // pred_check_branch
      %38 = sbr.rel (0) target = $region41
    $region40: #{tpu_custom_call.1} parent=1 // pred_region
      _
    $region41: #{tpu_custom_call.1} parent=1 // pred_fallthru
      _
    // Predicated region
    $region42: #{tpu_custom_call.1} parent=1 // pred_check
      _
    $region43: #{tpu_custom_call.1} parent=1 // pred_check_branch
      %40 = sbr.rel (0) target = $region45
    $region44: #{tpu_custom_call.1} parent=1 // pred_region
      _
    $region45: #{tpu_custom_call.1} parent=1 // pred_fallthru
      _
    // Predicated region
    $region46: #{tpu_custom_call.1} parent=1 // pred_check
      _
    $region47: #{tpu_custom_call.1} parent=1 // pred_check_branch
      %42 = sbr.rel (0) target = $region49
    $region48: #{tpu_custom_call.1} parent=1 // pred_region
      _
    $region49: #{tpu_custom_call.1} parent=1 // pred_fallthru
      _
    // Predicated region
    $region50: #{tpu_custom_call.1} parent=1 // pred_check
      _
    $region51: #{tpu_custom_call.1} parent=1 // pred_check_branch
      %44 = sbr.rel (0) target = $region53
    $region52: #{tpu_custom_call.1} parent=1 // pred_region
      _
    $region53: #{tpu_custom_call.1} parent=1 // pred_fallthru
      _
    %v46 = vld [vmem:[%s0] sm:$0xff]
    %v47 = vld [vmem:[%s0 + $0x8] sm:$0xff]
    %v48 = vld [vmem:[%s0 + $0x10] sm:$0xff]
    %v49 = vld [vmem:[%s0 + $0x18] sm:$0xff]
    %v50 = vld [vmem:[%s1] sm:$0xf]
    %v51 = vld [vmem:[%s1 + $0x4] sm:$0xf]
    %v52 = vld [vmem:[%s1 + $0x8] sm:$0xf]
    %v53 = vld [vmem:[%s1 + $0xc] sm:$0xf]
    %v54 = vld [vmem:[%s1 + $0x10] sm:$0xf]
    %v55 = vld [vmem:[%s1 + $0x14] sm:$0xf]
    %v56 = vld [vmem:[%s1 + $0x18] sm:$0xf]
    %v57 = vld [vmem:[%s1 + $0x1c] sm:$0xf]
    %v58 = vld [vmem:[%s1 + $0x20] sm:$0xf]
    %v59 = vld [vmem:[%s1 + $0x24] sm:$0xf]
    %v60 = vld [vmem:[%s1 + $0x28] sm:$0xf]
    %v61 = vld [vmem:[%s1 + $0x2c] sm:$0xf]
    %v62 = vld [vmem:[%s1 + $0x30] sm:$0xf]
    %v63 = vld [vmem:[%s1 + $0x34] sm:$0xf]
    %v64 = vld [vmem:[%s1 + $0x38] sm:$0xf]
    %v65 = vld [vmem:[%s1 + $0x3c] sm:$0xf]
    %v66 = vld [vmem:[%s1 + $0x40] sm:$0xf]
    %v67 = vld [vmem:[%s1 + $0x44] sm:$0xf]
    %v68 = vld [vmem:[%s1 + $0x48] sm:$0xf]
    %v69 = vld [vmem:[%s1 + $0x4c] sm:$0xf]
    %v70 = vld [vmem:[%s1 + $0x50] sm:$0xf]
    %v71 = vld [vmem:[%s1 + $0x54] sm:$0xf]
    %v72 = vld [vmem:[%s1 + $0x58] sm:$0xf]
    %v73 = vld [vmem:[%s1 + $0x5c] sm:$0xf]
    %v74 = vld [vmem:[%s1 + $0x60] sm:$0xf]
    %v75 = vld [vmem:[%s1 + $0x64] sm:$0xf]
    %v76 = vld [vmem:[%s1 + $0x68] sm:$0xf]
    %v77 = vld [vmem:[%s1 + $0x6c] sm:$0xf]
    %v78 = vld [vmem:[%s1 + $0x70] sm:$0xf]
    %v79 = vld [vmem:[%s1 + $0x74] sm:$0xf]
    %v80 = vld [vmem:[%s1 + $0x78] sm:$0xf]
    %v81 = vld [vmem:[%s1 + $0x7c] sm:$0xf]
    %v82 = vld [vmem:[%s1 + $0x80] sm:$0xf]
    %v83 = vld [vmem:[%s1 + $0x84] sm:$0xf]
    %v84 = vld [vmem:[%s1 + $0x88] sm:$0xf]
    %v85 = vld [vmem:[%s1 + $0x8c] sm:$0xf]
    %v86 = vld [vmem:[%s1 + $0x90] sm:$0xf]
    %v87 = vld [vmem:[%s1 + $0x94] sm:$0xf]
    %v88 = vld [vmem:[%s1 + $0x98] sm:$0xf]
    %v89 = vld [vmem:[%s1 + $0x9c] sm:$0xf]
    %v90 = vld [vmem:[%s1 + $0xa0] sm:$0xf]
    %v91 = vld [vmem:[%s1 + $0xa4] sm:$0xf]
    %v92 = vld [vmem:[%s1 + $0xa8] sm:$0xf]
    %v93 = vld [vmem:[%s1 + $0xac] sm:$0xf]
    %v94 = vld [vmem:[%s1 + $0xb0] sm:$0xf]
    %v95 = vld [vmem:[%s1 + $0xb4] sm:$0xf]
    %v96 = vld [vmem:[%s1 + $0xb8] sm:$0xf]
    %v97 = vld [vmem:[%s1 + $0xbc] sm:$0xf]
    %v98 = vld [vmem:[%s1 + $0xc0] sm:$0xf]
    %v99 = vld [vmem:[%s1 + $0xc4] sm:$0xf]
    %v100 = vld [vmem:[%s2] sm:$0x1]
    %v102 = vperm.slane %v100, 0
    %v108 = vunpack.c.l.b16 %v46
    %v109 = vunpack.c.h.b16 %v46
    %v110 = vunpack.c.l.b16 %v47
    %v111 = vunpack.c.h.b16 %v47
    %v112 = vunpack.c.l.b16 %v48
    %v113 = vunpack.c.h.b16 %v48
    %v114 = vunpack.c.l.b16 %v49
    %v115 = vunpack.c.h.b16 %v49
    %v116 = vpack.c.b16 %v112, %v108
    %v117 = vpack.c.b16 %v113, %v109
    %v118 = vpack.c.b16 %v114, %v110
    %v119 = vpack.c.b16 %v115, %v111
    %v173 = vunpack.c.l.b16 %v50
    %v174 = vunpack.c.l.b16 %v51
    %v175 = vunpack.c.l.b16 %v52
    %v176 = vunpack.c.l.b16 %v53
    %v177 = vunpack.c.l.b16 %v54
    %v178 = vunpack.c.l.b16 %v55
    %v179 = vunpack.c.l.b16 %v56
    %v180 = vunpack.c.l.b16 %v57
    %v181 = vunpack.c.l.b16 %v58
    %v182 = vunpack.c.l.b16 %v59
    %v183 = vunpack.c.l.b16 %v60
    %v184 = vunpack.c.l.b16 %v61
    %v185 = vunpack.c.l.b16 %v62
    %v186 = vunpack.c.l.b16 %v63
    %v187 = vunpack.c.l.b16 %v64
    %v188 = vunpack.c.l.b16 %v65
    %v189 = vunpack.c.l.b16 %v66
    %v190 = vunpack.c.l.b16 %v67
    %v191 = vunpack.c.l.b16 %v68
    %v192 = vunpack.c.l.b16 %v69
    %v193 = vunpack.c.l.b16 %v70
    %v194 = vunpack.c.l.b16 %v71
    %v195 = vunpack.c.l.b16 %v72
    %v196 = vunpack.c.l.b16 %v73
    %v197 = vunpack.c.l.b16 %v74
    %v198 = vunpack.c.l.b16 %v75
    %v199 = vunpack.c.l.b16 %v76
    %v200 = vunpack.c.l.b16 %v77
    %v201 = vunpack.c.l.b16 %v78
    %v202 = vunpack.c.l.b16 %v79
    %v203 = vunpack.c.l.b16 %v80
    %v204 = vunpack.c.l.b16 %v81
    %v205 = vunpack.c.l.b16 %v82
    %v206 = vunpack.c.l.b16 %v83
    %v207 = vunpack.c.l.b16 %v84
    %v208 = vunpack.c.l.b16 %v85
    %v209 = vunpack.c.l.b16 %v86
    %v210 = vunpack.c.l.b16 %v87
    %v211 = vunpack.c.l.b16 %v88
    %v212 = vunpack.c.l.b16 %v89
    %v213 = vunpack.c.l.b16 %v90
    %v214 = vunpack.c.l.b16 %v91
    %v215 = vunpack.c.l.b16 %v92
    %v216 = vunpack.c.l.b16 %v93
    %v217 = vunpack.c.l.b16 %v94
    %v218 = vunpack.c.l.b16 %v95
    %v219 = vunpack.c.l.b16 %v96
    %v220 = vunpack.c.l.b16 %v97
    %v221 = vunpack.c.l.b16 %v98
    %v222 = vunpack.c.l.b16 %v99
    %v223 = vpack.c.b16 %v174, %v173
    %v224 = vpack.c.b16 %v176, %v175
    %v225 = vpack.c.b16 %v178, %v177
    %v226 = vpack.c.b16 %v180, %v179
    %v227 = vpack.c.b16 %v182, %v181
    %v228 = vpack.c.b16 %v184, %v183
    %v229 = vpack.c.b16 %v186, %v185
    %v230 = vpack.c.b16 %v188, %v187
    %v231 = vpack.c.b16 %v190, %v189
    %v232 = vpack.c.b16 %v192, %v191
    %v233 = vpack.c.b16 %v194, %v193
    %v234 = vpack.c.b16 %v196, %v195
    %v235 = vpack.c.b16 %v198, %v197
    %v236 = vpack.c.b16 %v200, %v199
    %v237 = vpack.c.b16 %v202, %v201
    %v238 = vpack.c.b16 %v204, %v203
    %v239 = vpack.c.b16 %v206, %v205
    %v240 = vpack.c.b16 %v208, %v207
    %v241 = vpack.c.b16 %v210, %v209
    %v242 = vpack.c.b16 %v212, %v211
    %v243 = vpack.c.b16 %v214, %v213
    %v244 = vpack.c.b16 %v216, %v215
    %v245 = vpack.c.b16 %v218, %v217
    %v246 = vpack.c.b16 %v220, %v219
    %v247 = vpack.c.b16 %v222, %v221
    %vm273 = vcmask 130048
    %v275 = vsel %vm273, %v119, 0
    %277 = vmatpush.bf16.msra.mxu0 %v230
    %278 = vmatpush.bf16.msra.mxu0 %v229
    %279 = vmatpush.bf16.msra.mxu0 %v228
    %280 = vmatpush.bf16.msra.mxu0 %v227
    %281 = vmatpush.bf16.msra.mxu0 %v226
    %282 = vmatpush.bf16.msra.mxu0 %v225
    %283 = vmatpush.bf16.msra.mxu0 %v224
    %284 = vmatpush.bf16.msra.mxu0 %v223
    %285 = vmatmul.bf16.gmra.mxu0 %v116
    %v286 = vpop.f32.mrf.mxu0
    %v287 = vadd.f32 %v102, %v286
    %v288 = vpop.f32.mrf.mxu0
    %v289 = vadd.f32 %v102, %v288
    %290 = vdwg.mxu0
    %291 = vmatpush.bf16.msra.mxu0 %v238
    %292 = vmatpush.bf16.msra.mxu0 %v237
    %293 = vmatpush.bf16.msra.mxu0 %v236
    %294 = vmatpush.bf16.msra.mxu0 %v235
    %295 = vmatpush.bf16.msra.mxu0 %v234
    %296 = vmatpush.bf16.msra.mxu0 %v233
    %297 = vmatpush.bf16.msra.mxu0 %v232
    %298 = vmatpush.bf16.msra.mxu0 %v231
    %299 = vmatmul.bf16.gmra.mxu0 %v117
    %v300 = vpop.f32.mrf.mxu0
    %v301 = vadd.f32 %v287, %v300
    %v302 = vpop.f32.mrf.mxu0
    %v303 = vadd.f32 %v289, %v302
    %304 = vdwg.mxu0
    %305 = vmatpush.bf16.msra.mxu0 %v246
    %306 = vmatpush.bf16.msra.mxu0 %v245
    %307 = vmatpush.bf16.msra.mxu0 %v244
    %308 = vmatpush.bf16.msra.mxu0 %v243
    %309 = vmatpush.bf16.msra.mxu0 %v242
    %310 = vmatpush.bf16.msra.mxu0 %v241
    %311 = vmatpush.bf16.msra.mxu0 %v240
    %312 = vmatpush.bf16.msra.mxu0 %v239
    %313 = vmatmul.bf16.gmra.mxu0 %v118
    %v314 = vpop.f32.mrf.mxu0
    %v315 = vadd.f32 %v301, %v314
    %v316 = vpop.f32.mrf.mxu0
    %v317 = vadd.f32 %v303, %v316
    %318 = vdwg.mxu0
    %319 = vmatpush.bf16.msra.mxu0 0
    %320 = vmatpush.bf16.msra.mxu0 0
    %321 = vmatpush.bf16.msra.mxu0 0
    %322 = vmatpush.bf16.msra.mxu0 0
    %323 = vmatpush.bf16.msra.mxu0 0
    %324 = vmatpush.bf16.msra.mxu0 0
    %325 = vmatpush.bf16.msra.mxu0 0
    %326 = vmatpush.bf16.msra.mxu0 %v247
    %327 = vmatmul.bf16.gmra.mxu0 %v275
    %v328 = vpop.f32.mrf.mxu0
    %v329 = vadd.f32 %v315, %v328
    %v330 = vpop.f32.mrf.mxu0
    %v331 = vadd.f32 %v317, %v330
    %332 = vdwg.mxu0
    %v333 = vmax.f32 %v329, 0.0
    %v334 = vmax.f32 %v331, 0.0
    %v335 = vld [vmem:[%s3] sm:$0xff]
    %v336 = vld [vmem:[%s3 + $0x8] sm:$0xff]
    %338 = vset.pattern.permute.xlu0 0
    %339 = vperm.xlu0 %338, %v335
    %v340 = vpop.permute.xlu0 %339
    %343 = vset.pattern.permute.xlu0 0
    %344 = vperm.xlu0 %343, %v336
    %v345 = vpop.permute.xlu0 %344
    %v347 = vmul.f32 %v333, %v340
    %v348 = vmul.f32 %v334, %v345
    %vm349 = vcmask 162816
    %v350 = vsel %vm349, %v347, -inf
    %v351 = vrot.slane %v350, 4
    %v352 = vmax.f32 %v350, %v351
    %v353 = vrot.slane %v352, 2
    %v354 = vmax.f32 %v352, %v353
    %v355 = vrot.slane %v354, 1
    %v356 = vmax.f32 %v354, %v355
    %v357 = vsel %vm349, %v348, -inf
    %v358 = vrot.slane %v357, 4
    %v359 = vmax.f32 %v357, %v358
    %v360 = vrot.slane %v359, 2
    %v361 = vmax.f32 %v359, %v360
    %v362 = vrot.slane %v361, 1
    %v363 = vmax.f32 %v361, %v362
    %vm364 = vcmask 1040384
    %v365 = vsel %vm364, %v356, %v363
    %v366 = vld [vmem:[%s4] sm:$0xff]
    %v367 = vld [vmem:[%s4 + $0x8] sm:$0xff]
    %v368 = vld [vmem:[%s4 + $0x10] sm:$0xff]
    %v369 = vld [vmem:[%s4 + $0x18] sm:$0xf]
    %v370 = vld [vmem:[%s4 + $0x1c] sm:$0xff]
    %v371 = vld [vmem:[%s4 + $0x24] sm:$0xff]
    %v372 = vld [vmem:[%s4 + $0x2c] sm:$0xff]
    %v373 = vld [vmem:[%s4 + $0x34] sm:$0xf]
    %v374 = vld [vmem:[%s5] sm:$0xf]
    %v375 = vld [vmem:[%s5 + $0x4] sm:$0xf]
    %v376 = vld [vmem:[%s5 + $0x8] sm:$0xf]
    %v377 = vld [vmem:[%s5 + $0xc] sm:$0xf]
    %v378 = vld [vmem:[%s5 + $0x10] sm:$0xf]
    %v379 = vld [vmem:[%s5 + $0x14] sm:$0xf]
    %v380 = vld [vmem:[%s5 + $0x18] sm:$0xf]
    %v381 = vld [vmem:[%s5 + $0x1c] sm:$0xf]
    %v382 = vld [vmem:[%s5 + $0x20] sm:$0xf]
    %v383 = vld [vmem:[%s5 + $0x24] sm:$0xf]
    %v384 = vld [vmem:[%s5 + $0x28] sm:$0xf]
    %v385 = vld [vmem:[%s5 + $0x2c] sm:$0xf]
    %v386 = vld [vmem:[%s5 + $0x30] sm:$0xf]
    %v387 = vld [vmem:[%s5 + $0x34] sm:$0xf]
    %v388 = vld [vmem:[%s5 + $0x38] sm:$0xf]
    %v389 = vld [vmem:[%s5 + $0x3c] sm:$0xf]
    %v390 = vld [vmem:[%s5 + $0x40] sm:$0xf]
    %v391 = vld [vmem:[%s5 + $0x44] sm:$0xf]
    %v392 = vld [vmem:[%s5 + $0x48] sm:$0xf]
    %v393 = vld [vmem:[%s5 + $0x4c] sm:$0xf]
    %v394 = vld [vmem:[%s5 + $0x50] sm:$0xf]
    %v395 = vld [vmem:[%s5 + $0x54] sm:$0xf]
    %v396 = vld [vmem:[%s5 + $0x58] sm:$0xf]
    %v397 = vld [vmem:[%s5 + $0x5c] sm:$0xf]
    %v398 = vld [vmem:[%s5 + $0x60] sm:$0xf]
    %v399 = vld [vmem:[%s5 + $0x64] sm:$0xf]
    %v400 = vld [vmem:[%s5 + $0x68] sm:$0xf]
    %v401 = vld [vmem:[%s5 + $0x6c] sm:$0xf]
    %v402 = vld [vmem:[%s5 + $0x70] sm:$0xf]
    %v403 = vld [vmem:[%s5 + $0x74] sm:$0xf]
    %v404 = vld [vmem:[%s5 + $0x78] sm:$0xf]
    %v405 = vld [vmem:[%s5 + $0x7c] sm:$0xf]
    %v406 = vld [vmem:[%s5 + $0x80] sm:$0xf]
    %v407 = vld [vmem:[%s5 + $0x84] sm:$0xf]
    %v408 = vld [vmem:[%s5 + $0x88] sm:$0xf]
    %v409 = vld [vmem:[%s5 + $0x8c] sm:$0xf]
    %v410 = vld [vmem:[%s5 + $0x90] sm:$0xf]
    %v411 = vld [vmem:[%s5 + $0x94] sm:$0xf]
    %v412 = vld [vmem:[%s5 + $0x98] sm:$0xf]
    %v413 = vld [vmem:[%s5 + $0x9c] sm:$0xf]
    %v414 = vld [vmem:[%s5 + $0xa0] sm:$0xf]
    %v415 = vld [vmem:[%s5 + $0xa4] sm:$0xf]
    %v416 = vld [vmem:[%s5 + $0xa8] sm:$0xf]
    %v417 = vld [vmem:[%s5 + $0xac] sm:$0xf]
    %v418 = vld [vmem:[%s5 + $0xb0] sm:$0xf]
    %v419 = vld [vmem:[%s5 + $0xb4] sm:$0xf]
    %v420 = vld [vmem:[%s5 + $0xb8] sm:$0xf]
    %v421 = vld [vmem:[%s5 + $0xbc] sm:$0xf]
    %v422 = vld [vmem:[%s5 + $0xc0] sm:$0xf]
    %v423 = vld [vmem:[%s5 + $0xc4] sm:$0xf]
    %v424 = vld [vmem:[%s5 + $0xc8] sm:$0xf]
    %v425 = vld [vmem:[%s5 + $0xcc] sm:$0xf]
    %v426 = vld [vmem:[%s5 + $0xd0] sm:$0xf]
    %v427 = vld [vmem:[%s5 + $0xd4] sm:$0xf]
    %v428 = vld [vmem:[%s5 + $0xd8] sm:$0xf]
    %v429 = vld [vmem:[%s5 + $0xdc] sm:$0xf]
    %v430 = vld [vmem:[%s5 + $0xe0] sm:$0xf]
    %v431 = vld [vmem:[%s5 + $0xe4] sm:$0xf]
    %v432 = vld [vmem:[%s5 + $0xe8] sm:$0xf]
    %v433 = vld [vmem:[%s5 + $0xec] sm:$0xf]
    %v434 = vld [vmem:[%s5 + $0xf0] sm:$0xf]
    %v435 = vld [vmem:[%s5 + $0xf4] sm:$0xf]
    %v436 = vld [vmem:[%s5 + $0xf8] sm:$0xf]
    %v437 = vld [vmem:[%s5 + $0xfc] sm:$0xf]
    %v438 = vld [vmem:[%s5 + $0x100] sm:$0xf]
    %v439 = vld [vmem:[%s5 + $0x104] sm:$0xf]
    %v440 = vld [vmem:[%s5 + $0x108] sm:$0xf]
    %v441 = vld [vmem:[%s5 + $0x10c] sm:$0xf]
    %v442 = vld [vmem:[%s5 + $0x110] sm:$0xf]
    %v443 = vld [vmem:[%s5 + $0x114] sm:$0xf]
    %v444 = vld [vmem:[%s5 + $0x118] sm:$0xf]
    %v445 = vld [vmem:[%s5 + $0x11c] sm:$0xf]
    %v446 = vld [vmem:[%s5 + $0x120] sm:$0xf]
    %v447 = vld [vmem:[%s5 + $0x124] sm:$0xf]
    %v448 = vld [vmem:[%s5 + $0x128] sm:$0xf]
    %v449 = vld [vmem:[%s5 + $0x12c] sm:$0xf]
    %v450 = vld [vmem:[%s5 + $0x130] sm:$0xf]
    %v451 = vld [vmem:[%s5 + $0x134] sm:$0xf]
    %v452 = vld [vmem:[%s5 + $0x138] sm:$0xf]
    %v453 = vld [vmem:[%s5 + $0x13c] sm:$0xf]
    %v454 = vld [vmem:[%s5 + $0x140] sm:$0xf]
    %v455 = vld [vmem:[%s5 + $0x144] sm:$0xf]
    %v456 = vld [vmem:[%s5 + $0x148] sm:$0xf]
    %v457 = vld [vmem:[%s5 + $0x14c] sm:$0xf]
    %v458 = vld [vmem:[%s5 + $0x150] sm:$0xf]
    %v459 = vld [vmem:[%s5 + $0x154] sm:$0xf]
    %v460 = vld [vmem:[%s5 + $0x158] sm:$0xf]
    %v461 = vld [vmem:[%s5 + $0x15c] sm:$0xf]
    %v462 = vld [vmem:[%s5 + $0x160] sm:$0xf]
    %v463 = vld [vmem:[%s5 + $0x164] sm:$0xf]
    %v464 = vld [vmem:[%s5 + $0x168] sm:$0xf]
    %v465 = vld [vmem:[%s5 + $0x16c] sm:$0xf]
    %v466 = vld [vmem:[%s5 + $0x170] sm:$0xf]
    %v467 = vld [vmem:[%s5 + $0x174] sm:$0xf]
    %v468 = vld [vmem:[%s5 + $0x178] sm:$0xf]
    %v469 = vld [vmem:[%s5 + $0x17c] sm:$0xf]
    %v470 = vld [vmem:[%s5 + $0x180] sm:$0xf]
    %v471 = vld [vmem:[%s5 + $0x184] sm:$0xf]
    %v472 = vld [vmem:[%s5 + $0x188] sm:$0xf]
    %v473 = vld [vmem:[%s5 + $0x18c] sm:$0xf]
    %v474 = vld [vmem:[%s6] sm:$0x1]
    %v476 = vperm.slane %v474, 0
    %v486 = vunpack.c.l.b16 %v366
    %v487 = vunpack.c.h.b16 %v366
    %v488 = vunpack.c.l.b16 %v367
    %v489 = vunpack.c.h.b16 %v367
    %v490 = vunpack.c.l.b16 %v368
    %v491 = vunpack.c.h.b16 %v368
    %v492 = vunpack.c.l.b16 %v369
    %v493 = vunpack.c.l.b16 %v370
    %v494 = vunpack.c.h.b16 %v370
    %v495 = vunpack.c.l.b16 %v371
    %v496 = vunpack.c.h.b16 %v371
    %v497 = vunpack.c.l.b16 %v372
    %v498 = vunpack.c.h.b16 %v372
    %v499 = vunpack.c.l.b16 %v373
    %v500 = vpack.c.b16 %v493, %v486
    %v501 = vpack.c.b16 %v494, %v487
    %v502 = vpack.c.b16 %v495, %v488
    %v503 = vpack.c.b16 %v496, %v489
    %v504 = vpack.c.b16 %v497, %v490
    %v505 = vpack.c.b16 %v498, %v491
    %v506 = vpack.c.b16 %v499, %v492
    %v613 = vunpack.c.l.b16 %v374
    %v614 = vunpack.c.l.b16 %v375
    %v615 = vunpack.c.l.b16 %v376
    %v616 = vunpack.c.l.b16 %v377
    %v617 = vunpack.c.l.b16 %v378
    %v618 = vunpack.c.l.b16 %v379
    %v619 = vunpack.c.l.b16 %v380
    %v620 = vunpack.c.l.b16 %v381
    %v621 = vunpack.c.l.b16 %v382
    %v622 = vunpack.c.l.b16 %v383
    %v623 = vunpack.c.l.b16 %v384
    %v624 = vunpack.c.l.b16 %v385
    %v625 = vunpack.c.l.b16 %v386
    %v626 = vunpack.c.l.b16 %v387
    %v627 = vunpack.c.l.b16 %v388
    %v628 = vunpack.c.l.b16 %v389
    %v629 = vunpack.c.l.b16 %v390
    %v630 = vunpack.c.l.b16 %v391
    %v631 = vunpack.c.l.b16 %v392
    %v632 = vunpack.c.l.b16 %v393
    %v633 = vunpack.c.l.b16 %v394
    %v634 = vunpack.c.l.b16 %v395
    %v635 = vunpack.c.l.b16 %v396
    %v636 = vunpack.c.l.b16 %v397
    %v637 = vunpack.c.l.b16 %v398
    %v638 = vunpack.c.l.b16 %v399
    %v639 = vunpack.c.l.b16 %v400
    %v640 = vunpack.c.l.b16 %v401
    %v641 = vunpack.c.l.b16 %v402
    %v642 = vunpack.c.l.b16 %v403
    %v643 = vunpack.c.l.b16 %v404
    %v644 = vunpack.c.l.b16 %v405
    %v645 = vunpack.c.l.b16 %v406
    %v646 = vunpack.c.l.b16 %v407
    %v647 = vunpack.c.l.b16 %v408
    %v648 = vunpack.c.l.b16 %v409
    %v649 = vunpack.c.l.b16 %v410
    %v650 = vunpack.c.l.b16 %v411
    %v651 = vunpack.c.l.b16 %v412
    %v652 = vunpack.c.l.b16 %v413
    %v653 = vunpack.c.l.b16 %v414
    %v654 = vunpack.c.l.b16 %v415
    %v655 = vunpack.c.l.b16 %v416
    %v656 = vunpack.c.l.b16 %v417
    %v657 = vunpack.c.l.b16 %v418
    %v658 = vunpack.c.l.b16 %v419
    %v659 = vunpack.c.l.b16 %v420
    %v660 = vunpack.c.l.b16 %v421
    %v661 = vunpack.c.l.b16 %v422
    %v662 = vunpack.c.l.b16 %v423
    %v663 = vunpack.c.l.b16 %v424
    %v664 = vunpack.c.l.b16 %v425
    %v665 = vunpack.c.l.b16 %v426
    %v666 = vunpack.c.l.b16 %v427
    %v667 = vunpack.c.l.b16 %v428
    %v668 = vunpack.c.l.b16 %v429
    %v669 = vunpack.c.l.b16 %v430
    %v670 = vunpack.c.l.b16 %v431
    %v671 = vunpack.c.l.b16 %v432
    %v672 = vunpack.c.l.b16 %v433
    %v673 = vunpack.c.l.b16 %v434
    %v674 = vunpack.c.l.b16 %v435
    %v675 = vunpack.c.l.b16 %v436
    %v676 = vunpack.c.l.b16 %v437
    %v677 = vunpack.c.l.b16 %v438
    %v678 = vunpack.c.l.b16 %v439
    %v679 = vunpack.c.l.b16 %v440
    %v680 = vunpack.c.l.b16 %v441
    %v681 = vunpack.c.l.b16 %v442
    %v682 = vunpack.c.l.b16 %v443
    %v683 = vunpack.c.l.b16 %v444
    %v684 = vunpack.c.l.b16 %v445
    %v685 = vunpack.c.l.b16 %v446
    %v686 = vunpack.c.l.b16 %v447
    %v687 = vunpack.c.l.b16 %v448
    %v688 = vunpack.c.l.b16 %v449
    %v689 = vunpack.c.l.b16 %v450
    %v690 = vunpack.c.l.b16 %v451
    %v691 = vunpack.c.l.b16 %v452
    %v692 = vunpack.c.l.b16 %v453
    %v693 = vunpack.c.l.b16 %v454
    %v694 = vunpack.c.l.b16 %v455
    %v695 = vunpack.c.l.b16 %v456
    %v696 = vunpack.c.l.b16 %v457
    %v697 = vunpack.c.l.b16 %v458
    %v698 = vunpack.c.l.b16 %v459
    %v699 = vunpack.c.l.b16 %v460
    %v700 = vunpack.c.l.b16 %v461
    %v701 = vunpack.c.l.b16 %v462
    %v702 = vunpack.c.l.b16 %v463
    %v703 = vunpack.c.l.b16 %v464
    %v704 = vunpack.c.l.b16 %v465
    %v705 = vunpack.c.l.b16 %v466
    %v706 = vunpack.c.l.b16 %v467
    %v707 = vunpack.c.l.b16 %v468
    %v708 = vunpack.c.l.b16 %v469
    %v709 = vunpack.c.l.b16 %v470
    %v710 = vunpack.c.l.b16 %v471
    %v711 = vunpack.c.l.b16 %v472
    %v712 = vunpack.c.l.b16 %v473
    %v713 = vpack.c.b16 %v614, %v613
    %v714 = vpack.c.b16 %v616, %v615
    %v715 = vpack.c.b16 %v618, %v617
    %v716 = vpack.c.b16 %v620, %v619
    %v717 = vpack.c.b16 %v622, %v621
    %v718 = vpack.c.b16 %v624, %v623
    %v719 = vpack.c.b16 %v626, %v625
    %v720 = vpack.c.b16 %v628, %v627
    %v721 = vpack.c.b16 %v630, %v629
    %v722 = vpack.c.b16 %v632, %v631
    %v723 = vpack.c.b16 %v634, %v633
    %v724 = vpack.c.b16 %v636, %v635
    %v725 = vpack.c.b16 %v638, %v637
    %v726 = vpack.c.b16 %v640, %v639
    %v727 = vpack.c.b16 %v642, %v641
    %v728 = vpack.c.b16 %v644, %v643
    %v729 = vpack.c.b16 %v646, %v645
    %v730 = vpack.c.b16 %v648, %v647
    %v731 = vpack.c.b16 %v650, %v649
    %v732 = vpack.c.b16 %v652, %v651
    %v733 = vpack.c.b16 %v654, %v653
    %v734 = vpack.c.b16 %v656, %v655
    %v735 = vpack.c.b16 %v658, %v657
    %v736 = vpack.c.b16 %v660, %v659
    %v737 = vpack.c.b16 %v662, %v661
    %v738 = vpack.c.b16 %v664, %v663
    %v739 = vpack.c.b16 %v666, %v665
    %v740 = vpack.c.b16 %v668, %v667
    %v741 = vpack.c.b16 %v670, %v669
    %v742 = vpack.c.b16 %v672, %v671
    %v743 = vpack.c.b16 %v674, %v673
    %v744 = vpack.c.b16 %v676, %v675
    %v745 = vpack.c.b16 %v678, %v677
    %v746 = vpack.c.b16 %v680, %v679
    %v747 = vpack.c.b16 %v682, %v681
    %v748 = vpack.c.b16 %v684, %v683
    %v749 = vpack.c.b16 %v686, %v685
    %v750 = vpack.c.b16 %v688, %v687
    %v751 = vpack.c.b16 %v690, %v689
    %v752 = vpack.c.b16 %v692, %v691
    %v753 = vpack.c.b16 %v694, %v693
    %v754 = vpack.c.b16 %v696, %v695
    %v755 = vpack.c.b16 %v698, %v697
    %v756 = vpack.c.b16 %v700, %v699
    %v757 = vpack.c.b16 %v702, %v701
    %v758 = vpack.c.b16 %v704, %v703
    %v759 = vpack.c.b16 %v706, %v705
    %v760 = vpack.c.b16 %v708, %v707
    %v761 = vpack.c.b16 %v710, %v709
    %v762 = vpack.c.b16 %v712, %v711
    %vm813 = vcmask 261120
    %v815 = vsel %vm813, %v506, 0
    %817 = vmatpush.bf16.msra.mxu0 %v720
    %818 = vmatpush.bf16.msra.mxu0 %v719
    %819 = vmatpush.bf16.msra.mxu0 %v718
    %820 = vmatpush.bf16.msra.mxu0 %v717
    %821 = vmatpush.bf16.msra.mxu0 %v716
    %822 = vmatpush.bf16.msra.mxu0 %v715
    %823 = vmatpush.bf16.msra.mxu0 %v714
    %824 = vmatpush.bf16.msra.mxu0 %v713
    %825 = vmatmul.bf16.gmra.mxu0 %v500
    %v826 = vpop.f32.mrf.mxu0
    %v827 = vadd.f32 %v476, %v826
    %v828 = vpop.f32.mrf.mxu0
    %v829 = vadd.f32 %v476, %v828
    %830 = vdwg.mxu0
    %831 = vmatpush.bf16.msra.mxu0 %v728
    %832 = vmatpush.bf16.msra.mxu0 %v727
    %833 = vmatpush.bf16.msra.mxu0 %v726
    %834 = vmatpush.bf16.msra.mxu0 %v725
    %835 = vmatpush.bf16.msra.mxu0 %v724
    %836 = vmatpush.bf16.msra.mxu0 %v723
    %837 = vmatpush.bf16.msra.mxu0 %v722
    %838 = vmatpush.bf16.msra.mxu0 %v721
    %839 = vmatmul.bf16.gmra.mxu0 %v501
    %v840 = vpop.f32.mrf.mxu0
    %v841 = vadd.f32 %v827, %v840
    %v842 = vpop.f32.mrf.mxu0
    %v843 = vadd.f32 %v829, %v842
    %844 = vdwg.mxu0
    %845 = vmatpush.bf16.msra.mxu0 %v736
    %846 = vmatpush.bf16.msra.mxu0 %v735
    %847 = vmatpush.bf16.msra.mxu0 %v734
    %848 = vmatpush.bf16.msra.mxu0 %v733
    %849 = vmatpush.bf16.msra.mxu0 %v732
    %850 = vmatpush.bf16.msra.mxu0 %v731
    %851 = vmatpush.bf16.msra.mxu0 %v730
    %852 = vmatpush.bf16.msra.mxu0 %v729
    %853 = vmatmul.bf16.gmra.mxu0 %v502
    %v854 = vpop.f32.mrf.mxu0
    %v855 = vadd.f32 %v841, %v854
    %v856 = vpop.f32.mrf.mxu0
    %v857 = vadd.f32 %v843, %v856
    %858 = vdwg.mxu0
    %859 = vmatpush.bf16.msra.mxu0 %v744
    %860 = vmatpush.bf16.msra.mxu0 %v743
    %861 = vmatpush.bf16.msra.mxu0 %v742
    %862 = vmatpush.bf16.msra.mxu0 %v741
    %863 = vmatpush.bf16.msra.mxu0 %v740
    %864 = vmatpush.bf16.msra.mxu0 %v739
    %865 = vmatpush.bf16.msra.mxu0 %v738
    %866 = vmatpush.bf16.msra.mxu0 %v737
    %867 = vmatmul.bf16.gmra.mxu0 %v503
    %v868 = vpop.f32.mrf.mxu0
    %v869 = vadd.f32 %v855, %v868
    %v870 = vpop.f32.mrf.mxu0
    %v871 = vadd.f32 %v857, %v870
    %872 = vdwg.mxu0
    %873 = vmatpush.bf16.msra.mxu0 %v752
    %874 = vmatpush.bf16.msra.mxu0 %v751
    %875 = vmatpush.bf16.msra.mxu0 %v750
    %876 = vmatpush.bf16.msra.mxu0 %v749
    %877 = vmatpush.bf16.msra.mxu0 %v748
    %878 = vmatpush.bf16.msra.mxu0 %v747
    %879 = vmatpush.bf16.msra.mxu0 %v746
    %880 = vmatpush.bf16.msra.mxu0 %v745
    %881 = vmatmul.bf16.gmra.mxu0 %v504
    %v882 = vpop.f32.mrf.mxu0
    %v883 = vadd.f32 %v869, %v882
    %v884 = vpop.f32.mrf.mxu0
    %v885 = vadd.f32 %v871, %v884
    %886 = vdwg.mxu0
    %887 = vmatpush.bf16.msra.mxu0 %v760
    %888 = vmatpush.bf16.msra.mxu0 %v759
    %889 = vmatpush.bf16.msra.mxu0 %v758
    %890 = vmatpush.bf16.msra.mxu0 %v757
    %891 = vmatpush.bf16.msra.mxu0 %v756
    %892 = vmatpush.bf16.msra.mxu0 %v755
    %893 = vmatpush.bf16.msra.mxu0 %v754
    %894 = vmatpush.bf16.msra.mxu0 %v753
    %895 = vmatmul.bf16.gmra.mxu0 %v505
    %v896 = vpop.f32.mrf.mxu0
    %v897 = vadd.f32 %v883, %v896
    %v898 = vpop.f32.mrf.mxu0
    %v899 = vadd.f32 %v885, %v898
    %900 = vdwg.mxu0
    %901 = vmatpush.bf16.msra.mxu0 0
    %902 = vmatpush.bf16.msra.mxu0 0
    %903 = vmatpush.bf16.msra.mxu0 0
    %904 = vmatpush.bf16.msra.mxu0 0
    %905 = vmatpush.bf16.msra.mxu0 0
    %906 = vmatpush.bf16.msra.mxu0 0
    %907 = vmatpush.bf16.msra.mxu0 %v762
    %908 = vmatpush.bf16.msra.mxu0 %v761
    %909 = vmatmul.bf16.gmra.mxu0 %v815
    %v910 = vpop.f32.mrf.mxu0
    %v911 = vadd.f32 %v897, %v910
    %v912 = vpop.f32.mrf.mxu0
    %v913 = vadd.f32 %v899, %v912
    %914 = vdwg.mxu0
    %v915 = vmax.f32 %v911, 0.0
    %v916 = vmax.f32 %v913, 0.0
    %v917 = vld [vmem:[%s7] sm:$0xff]
    %v918 = vld [vmem:[%s7 + $0x8] sm:$0xff]
    %920 = vset.pattern.permute.xlu0 0
    %921 = vperm.xlu0 %920, %v917
    %v922 = vpop.permute.xlu0 %921
    %925 = vset.pattern.permute.xlu0 0
    %926 = vperm.xlu0 %925, %v918
    %v927 = vpop.permute.xlu0 %926
    %v929 = vmul.f32 %v915, %v922
    %v930 = vmul.f32 %v916, %v927
    %v931 = vsel %vm349, %v929, -inf
    %v932 = vrot.slane %v931, 4
    %v933 = vmax.f32 %v931, %v932
    %v934 = vrot.slane %v933, 2
    %v935 = vmax.f32 %v933, %v934
    %v936 = vrot.slane %v935, 1
    %v937 = vmax.f32 %v935, %v936
    %v938 = vsel %vm349, %v930, -inf
    %v939 = vrot.slane %v938, 4
    %v940 = vmax.f32 %v938, %v939
    %v941 = vrot.slane %v940, 2
    %v942 = vmax.f32 %v940, %v941
    %v943 = vrot.slane %v942, 1
    %v944 = vmax.f32 %v942, %v943
    %v945 = vsel %vm364, %v937, %v944
    %v946 = vld [vmem:[%s8] sm:$0xff]
    %v947 = vld [vmem:[%s8 + $0x8] sm:$0xff]
    %v948 = vld [vmem:[%s8 + $0x10] sm:$0xf]
    %v949 = vld [vmem:[%s9] sm:$0x1]
    %v951 = vperm.slane %v949, 0
    %v954 = vsel %vm349, %v365, 0
    %vm956 = vcmask 1043456
    %v958 = vsel %vm956, %v948, 0
    %960 = vmatpush.msra.mxu0 0.0
    %961 = vmatpush.msra.mxu0 0.0
    %962 = vmatpush.msra.mxu0 0.0
    %963 = vmatpush.msra.mxu0 0.0
    %964 = vmatpush.msra.mxu0 0.0
    %965 = vmatpush.msra.mxu0 0.0
    %966 = vmatpush.msra.mxu0 0.0
    %967 = vmatpush.msra.mxu0 0.0
    %968 = vmatpush.msra.mxu0 0.0
    %969 = vmatpush.msra.mxu0 0.0
    %970 = vmatpush.msra.mxu0 0.0
    %971 = vmatpush.msra.mxu0 0.0
    %972 = vmatpush.msra.mxu0 0.0
    %973 = vmatpush.msra.mxu0 %v958
    %974 = vmatpush.msra.mxu0 %v947
    %975 = vmatpush.msra.mxu0 %v946
    %976 = vmatmul.f32.gmra.mxu0 %v954
    %v977 = vpop.f32.mrf.mxu0
    %v978 = vadd.f32 %v951, %v977
    %979 = vdwg.mxu0
    %v981 = vsel %vm349, %v945, 0
    %983 = vmatpush.msra.mxu0 0.0
    %984 = vmatpush.msra.mxu0 0.0
    %985 = vmatpush.msra.mxu0 0.0
    %986 = vmatpush.msra.mxu0 0.0
    %987 = vmatpush.msra.mxu0 0.0
    %988 = vmatpush.msra.mxu0 0.0
    %989 = vmatpush.msra.mxu0 0.0
    %990 = vmatpush.msra.mxu0 0.0
    %991 = vmatpush.msra.mxu0 0.0
    %992 = vmatpush.msra.mxu0 0.0
    %993 = vmatpush.msra.mxu0 0.0
    %994 = vmatpush.msra.mxu0 0.0
    %995 = vmatpush.msra.mxu0 0.0
    %996 = vmatpush.msra.mxu0 %v958
    %997 = vmatpush.msra.mxu0 %v947
    %998 = vmatpush.msra.mxu0 %v946
    %999 = vmatmul.f32.gmra.mxu0 %v981
    %v1000 = vpop.f32.mrf.mxu0
    %v1001 = vadd.f32 %v951, %v1000
    %1002 = vdwg.mxu0
    %v1003 = vld [vmem:[%s10] sm:$0xff]
    %v1004 = vld [vmem:[%s10 + $0x8] sm:$0xff]
    %v1005 = vld [vmem:[%s10 + $0x10] sm:$0xf]
    %1007 = vrot.lane.b32.xlu0 %v978, 108
    %v1008 = vpop.permute.xlu0 %1007
    %v1010 = vmul.f32 %v978, %v1008
    %v1012 = vsel %vm349, %v1010, 0
    %v1015 = vsel %vm956, %v1005, 0
    %1017 = vmatpush.msra.mxu0 0.0
    %1018 = vmatpush.msra.mxu0 0.0
    %1019 = vmatpush.msra.mxu0 0.0
    %1020 = vmatpush.msra.mxu0 0.0
    %1021 = vmatpush.msra.mxu0 0.0
    %1022 = vmatpush.msra.mxu0 0.0
    %1023 = vmatpush.msra.mxu0 0.0
    %1024 = vmatpush.msra.mxu0 0.0
    %1025 = vmatpush.msra.mxu0 0.0
    %1026 = vmatpush.msra.mxu0 0.0
    %1027 = vmatpush.msra.mxu0 0.0
    %1028 = vmatpush.msra.mxu0 0.0
    %1029 = vmatpush.msra.mxu0 0.0
    %1030 = vmatpush.msra.mxu0 %v1015
    %1031 = vmatpush.msra.mxu0 %v1004
    %1032 = vmatpush.msra.mxu0 %v1003
    %1033 = vmatmul.f32.gmra.mxu0 %v1012
    %v1034 = vpop.f32.mrf.mxu0
    %v1035 = vadd.f32 0.0, %v1034
    %1036 = vdwg.mxu0
    %1038 = vrot.lane.b32.xlu0 %v1001, 108
    %v1039 = vpop.permute.xlu0 %1038
    %v1041 = vmul.f32 %v978, %v1039
    %v1043 = vsel %vm349, %v1041, 0
    %1045 = vmatpush.msra.mxu0 0.0
    %1046 = vmatpush.msra.mxu0 0.0
    %1047 = vmatpush.msra.mxu0 0.0
    %1048 = vmatpush.msra.mxu0 0.0
    %1049 = vmatpush.msra.mxu0 0.0
    %1050 = vmatpush.msra.mxu0 0.0
    %1051 = vmatpush.msra.mxu0 0.0
    %1052 = vmatpush.msra.mxu0 0.0
    %1053 = vmatpush.msra.mxu0 0.0
    %1054 = vmatpush.msra.mxu0 0.0
    %1055 = vmatpush.msra.mxu0 0.0
    %1056 = vmatpush.msra.mxu0 0.0
    %1057 = vmatpush.msra.mxu0 0.0
    %1058 = vmatpush.msra.mxu0 %v1015
    %1059 = vmatpush.msra.mxu0 %v1004
    %1060 = vmatpush.msra.mxu0 %v1003
    %1061 = vmatmul.f32.gmra.mxu0 %v1043
    %v1062 = vpop.f32.mrf.mxu0
    %v1063 = vadd.f32 0.0, %v1062
    %1064 = vdwg.mxu0
    %v1065 = vmul.f32 %v1001, %v1008
    %v1067 = vsel %vm349, %v1065, 0
    %1069 = vmatpush.msra.mxu0 0.0
    %1070 = vmatpush.msra.mxu0 0.0
    %1071 = vmatpush.msra.mxu0 0.0
    %1072 = vmatpush.msra.mxu0 0.0
    %1073 = vmatpush.msra.mxu0 0.0
    %1074 = vmatpush.msra.mxu0 0.0
    %1075 = vmatpush.msra.mxu0 0.0
    %1076 = vmatpush.msra.mxu0 0.0
    %1077 = vmatpush.msra.mxu0 0.0
    %1078 = vmatpush.msra.mxu0 0.0
    %1079 = vmatpush.msra.mxu0 0.0
    %1080 = vmatpush.msra.mxu0 0.0
    %1081 = vmatpush.msra.mxu0 0.0
    %1082 = vmatpush.msra.mxu0 %v1015
    %1083 = vmatpush.msra.mxu0 %v1004
    %1084 = vmatpush.msra.mxu0 %v1003
    %1085 = vmatmul.f32.gmra.mxu0 %v1067
    %v1086 = vpop.f32.mrf.mxu0
    %v1087 = vadd.f32 0.0, %v1086
    %1088 = vdwg.mxu0
    %v1089 = vmul.f32 %v1001, %v1039
    %v1091 = vsel %vm349, %v1089, 0
    %1093 = vmatpush.msra.mxu0 0.0
    %1094 = vmatpush.msra.mxu0 0.0
    %1095 = vmatpush.msra.mxu0 0.0
    %1096 = vmatpush.msra.mxu0 0.0
    %1097 = vmatpush.msra.mxu0 0.0
    %1098 = vmatpush.msra.mxu0 0.0
    %1099 = vmatpush.msra.mxu0 0.0
    %1100 = vmatpush.msra.mxu0 0.0
    %1101 = vmatpush.msra.mxu0 0.0
    %1102 = vmatpush.msra.mxu0 0.0
    %1103 = vmatpush.msra.mxu0 0.0
    %1104 = vmatpush.msra.mxu0 0.0
    %1105 = vmatpush.msra.mxu0 0.0
    %1106 = vmatpush.msra.mxu0 %v1015
    %1107 = vmatpush.msra.mxu0 %v1004
    %1108 = vmatpush.msra.mxu0 %v1003
    %1109 = vmatmul.f32.gmra.mxu0 %v1091
    %v1110 = vpop.f32.mrf.mxu0
    %v1111 = vadd.f32 0.0, %v1110
    %1112 = vdwg.mxu0
    %v1113 = vmax.f32 %v1035, %v1063
    %v1114 = vsub.f32 %v1035, %v1113
    %v1115 = vmul.f32 %v1114, 1.442695
    %v1116 = vpow.pop %v1115
    %v1117 = vsub.f32 %v1063, %v1113
    %v1118 = vmul.f32 %v1117, 1.442695
    %v1119 = vpow.pop %v1118
    %v1120 = vadd.f32 %v1116, %v1119
    %v1121 = vrcp.pop %v1120
    %v1122 = vmax.f32 %v1087, %v1111
    %v1123 = vsub.f32 %v1087, %v1122
    %v1124 = vmul.f32 %v1123, 1.442695
    %v1125 = vpow.pop %v1124
    %v1126 = vsub.f32 %v1111, %v1122
    %v1127 = vmul.f32 %v1126, 1.442695
    %v1128 = vpow.pop %v1127
    %v1129 = vadd.f32 %v1125, %v1128
    %v1130 = vrcp.pop %v1129
    %v1131 = vmul.f32 %v1116, %v1121
    %v1132 = vmul.f32 %v1131, %v1008
    %v1133 = vmul.f32 %v1119, %v1121
    %v1134 = vmul.f32 %v1133, %v1039
    %v1135 = vadd.f32 %v1132, %v1134
    %v1136 = vmul.f32 %v1125, %v1130
    %v1137 = vmul.f32 %v1136, %v1008
    %v1138 = vmul.f32 %v1128, %v1130
    %v1139 = vmul.f32 %v1138, %v1039
    %v1140 = vadd.f32 %v1137, %v1139
    %v1141 = vadd.f32 %v1135, %v365
    %v1142 = vadd.f32 %v1140, %v945
    %v1143 = vld [vmem:[%s11] sm:$0xff]
    %v1144 = vld [vmem:[%s11 + $0x8] sm:$0xff]
    %v1145 = vld [vmem:[%s11 + $0x10] sm:$0xf]
    %s1146 = scalar_lea.vmem %s11, 24
    %v1147 = vld [vmem:[%s1146] sm:$0xff]
    %v1148 = vld [vmem:[%s1146 + $0x8] sm:$0xff]
    %v1149 = vld [vmem:[%s1146 + $0x10] sm:$0xf]
    %v1151 = vsel %vm349, %v1142, 0
    %v1154 = vsel %vm956, %v1149, 0
    %1156 = vmatpush.msra.mxu0 0.0
    %1157 = vmatpush.msra.mxu0 0.0
    %1158 = vmatpush.msra.mxu0 0.0
    %1159 = vmatpush.msra.mxu0 0.0
    %1160 = vmatpush.msra.mxu0 0.0
    %1161 = vmatpush.msra.mxu0 0.0
    %1162 = vmatpush.msra.mxu0 0.0
    %1163 = vmatpush.msra.mxu0 0.0
    %1164 = vmatpush.msra.mxu0 0.0
    %1165 = vmatpush.msra.mxu0 0.0
    %1166 = vmatpush.msra.mxu0 0.0
    %1167 = vmatpush.msra.mxu0 0.0
    %1168 = vmatpush.msra.mxu0 0.0
    %1169 = vmatpush.msra.mxu0 %v1154
    %1170 = vmatpush.msra.mxu0 %v1148
    %1171 = vmatpush.msra.mxu0 %v1147
    %1172 = vmatmul.f32.gmra.mxu0 %v1151
    %v1173 = vpop.f32.mrf.mxu0
    %v1174 = vadd.f32 0.0, %v1173
    %1175 = vdwg.mxu0
    %v1177 = vsel %vm349, %v1141, 0
    %v1180 = vsel %vm956, %v1145, 0
    %1182 = vmatpush.msra.mxu0 0.0
    %1183 = vmatpush.msra.mxu0 0.0
    %1184 = vmatpush.msra.mxu0 0.0
    %1185 = vmatpush.msra.mxu0 0.0
    %1186 = vmatpush.msra.mxu0 0.0
    %1187 = vmatpush.msra.mxu0 0.0
    %1188 = vmatpush.msra.mxu0 0.0
    %1189 = vmatpush.msra.mxu0 0.0
    %1190 = vmatpush.msra.mxu0 0.0
    %1191 = vmatpush.msra.mxu0 0.0
    %1192 = vmatpush.msra.mxu0 0.0
    %1193 = vmatpush.msra.mxu0 0.0
    %1194 = vmatpush.msra.mxu0 0.0
    %1195 = vmatpush.msra.mxu0 %v1180
    %1196 = vmatpush.msra.mxu0 %v1144
    %1197 = vmatpush.msra.mxu0 %v1143
    %1198 = vmatmul.f32.gmra.mxu0 %v1177
    %v1199 = vpop.f32.mrf.mxu0
    %v1200 = vadd.f32 %v1174, %v1199
    %1201 = vdwg.mxu0
    %v1202 = vld [vmem:[%s12] sm:$0x1]
    %v1204 = vperm.slane %v1202, 0
    %v1206 = vadd.f32 %v1200, %v1204
    %vm1207 = vcmask 25600
    %1208 = vst.msk [vmem:[#allocation2] sm:$0x3] %vm1207, %v1206
    // Predicated region
    $region54: #{tpu_custom_call.1} parent=1 // pred_check
      _
    $region55: #{tpu_custom_call.1} parent=1 // pred_check_branch
      %1210 = sbr.rel (0) target = $region57
    $region56: #{tpu_custom_call.1} parent=1 // pred_region
      %1212 = vsyncadd [#allocation3], 0
      %s1214 = sshll.u32 [#allocation2], 4
      %s1215 = int_to_ptr.vmem [resolvable:$true] %s1214
      %s1216 = sshll.u32 %s13, 4
      %s1217 = int_to_ptr.hbm [resolvable:$true] %s1216
      %1219 = dma.vmem_to_hbm [thread:$0]  %s1215, 32, %s1217, [#allocation3]
    $region57: #{tpu_custom_call.1} parent=1 // pred_fallthru
      _
    // Predicated region
    $region58: #{tpu_custom_call.1} parent=1 // pred_check
      _
    $region59: #{tpu_custom_call.1} parent=1 // pred_check_branch
      %1221 = sbr.rel (0) target = $region61
    $region60: #{tpu_custom_call.1} parent=1 // pred_region
      %1223 = dma.done [#allocation3], 32
    $region61: #{tpu_custom_call.1} parent=1 // pred_fallthru
      _
    %1224 = vsyncpa [#allocation3], 1

</llo_original>
